<compile_context>
chip_gen: v7x
topology: tpu7x:2x2x1
jax: 0.10.0
libtpu: 0.0.40
codegen_flags: <defaults>
</compile_context>

<pallas_src>
import jax
import jax.numpy as jnp
from jax.experimental import pallas as pl
from jax.experimental.pallas import tpu as pltpu


def _round_up(x, m):
    return ((x + m - 1) // m) * m


def _edge_proj_kernel(x_ref, w_ref, b_ref, o_ref):
    # One lane-dense MXU matmul + bias:
    #   (TR, P*2D) bf16 @ (P*2D, P*H) bf16 -> f32 acc, stored as bf16.
    acc = jnp.dot(x_ref[...], w_ref[...], preferred_element_type=jnp.float32)
    o_ref[...] = (acc + b_ref[...]).astype(o_ref.dtype)


def fold_conv_into_linear(w_conv, b_conv, w2, b2):
    """Fold Conv1d(2->1, k=3, pad=1) followed by Linear(D->H) into one affine map.

    w_conv: (2, 3) or torch-style (1, 2, 3). Returns (w_eff: (2D, H), b_eff: (H,))
    such that concat([src, dst], -1) @ w_eff + b_eff == Linear(Conv1d(stack([src, dst]))).
    """
    if w_conv.ndim == 3:              # torch Conv1d weight is (out_ch=1, in_ch=2, k=3)
        w_conv = w_conv[0]
    D, H = w2.shape
    zero = jnp.zeros((1, H), w2.dtype)
    w2_up = jnp.concatenate([w2[1:], zero], axis=0)    # row j -> W2[j+1] (0 off end)
    w2_dn = jnp.concatenate([zero, w2[:-1]], axis=0)   # row j -> W2[j-1] (0 off end)
    w_src = w_conv[0, 0] * w2_up + w_conv[0, 1] * w2 + w_conv[0, 2] * w2_dn
    w_dst = w_conv[1, 0] * w2_up + w_conv[1, 1] * w2 + w_conv[1, 2] * w2_dn
    w_eff = jnp.concatenate([w_src, w_dst], axis=0)               # (2D, H)
    b_eff = b_conv[0] * jnp.sum(w2, axis=0) + b2.reshape(-1)      # (H,)
    return w_eff, b_eff


def _edge_pack(hidden_dim):
    # Pack edges per output row so the output last dim is 128 lanes (lane-dense
    # stores). If H does not divide 128 stores fall back to masked vst: still
    # correct, but a known perf cliff.
    return 128 // hidden_dim if (hidden_dim <= 128 and 128 % hidden_dim == 0) else 1


def edge_projection(x, w_eff, b_eff, *, tile_rows=8192):
    """out[e] = x[e] @ w_eff + b_eff for x: (E, K) bf16 -> (E, H) bf16, one MXU matmul.

    E must already be a multiple of the packing factor (pad the cheap edge-index
    arrays before gathering, NOT this feature array).
    """
    E, K = x.shape
    H = b_eff.shape[0]
    pack = _edge_pack(H)
    assert E % pack == 0, "pad the edge-index arrays to a multiple of the pack factor"
    rows = E // pack

    # Block-diagonal weight / tiled bias for the packed layout (broadcast build).
    if pack > 1:
        eye = jnp.eye(pack, dtype=w_eff.dtype)
        w_blk = (eye[:, None, :, None] * w_eff[None, :, None, :]).reshape(pack * K, pack * H)
        b_blk = jnp.tile(b_eff.reshape(-1), pack)
    else:
        w_blk, b_blk = w_eff, b_eff.reshape(-1)

    x_packed = x.reshape(rows, pack * K)
    w_bf = w_blk.astype(jnp.bfloat16)
    b_2d = b_blk.reshape(1, pack * H).astype(jnp.float32)

    # Single grid step when the problem fits one tile (no forced split on
    # single-TC v5e/v6e); otherwise an even step count so v7x's two TensorCores
    # share the "parallel" axis evenly. Ragged last block handled by Pallas.
    n_steps = pl.cdiv(rows, tile_rows)
    if n_steps > 1 and n_steps % 2 == 1:
        n_steps += 1
    tr = min(tile_rows, max(16, _round_up(pl.cdiv(rows, n_steps), 16)))
    grid = (pl.cdiv(rows, tr),)

    out = pl.pallas_call(
        _edge_proj_kernel,
        out_shape=jax.ShapeDtypeStruct((rows, pack * H), jnp.bfloat16),
        grid_spec=pltpu.PrefetchScalarGridSpec(
            num_scalar_prefetch=0,
            grid=grid,
            in_specs=[
                pl.BlockSpec((tr, pack * K), lambda i: (i, 0)),         # packed edges
                pl.BlockSpec((pack * K, pack * H), lambda i: (0, 0)),   # weight (resident)
                pl.BlockSpec((1, pack * H), lambda i: (0, 0)),          # bias (resident)
            ],
            out_specs=pl.BlockSpec((tr, pack * H), lambda i: (i, 0)),
        ),
        compiler_params=pltpu.CompilerParams(
            dimension_semantics=("parallel",)),
    )(x_packed, w_bf, b_2d)

    return out.reshape(E, H)


def merg_forward(params, g_edges, g_emb_h, sg_edges, sg_emb_h, *, tile_rows=8192):
    """Implementable part of MERG.forward: local edge projections for g and s_g."""
    # TODO(synk): CrossTransformer (CrossTransformerEncoder class is not provided
    # in the spec) and the ops that consume its outputs (edge_proj3, edge_proj4,
    # BatchNorm1d, ReLU, dropout) are not implemented.
    w_conv, b_conv, w2, b2 = params
    w_eff, b_eff = fold_conv_into_linear(w_conv, b_conv, w2, b2)

    D = g_emb_h.shape[1]
    H = b_eff.shape[0]
    e_g, e_sg = g_edges.shape[1], sg_edges.shape[1]
    pack = _edge_pack(H)

    # Pad only the tiny s_g edge-index array (<= pack-1 extra edges, index 0) so
    # the fused edge count is a multiple of the packing factor.
    pad_e = (-(e_g + e_sg)) % pack
    sg_idx = jnp.pad(sg_edges, ((0, 0), (0, pad_e))) if pad_e else sg_edges

    # Gather per-edge (src, dst) node embeddings straight into (E, 2, D) bf16 and
    # do a free reshape to (E, 2D); fuse the g / s_g edge batches into one launch.
    def gather(edges, emb):
        return emb.astype(jnp.bfloat16)[edges.T].reshape(edges.shape[1], 2 * D)

    x = jnp.concatenate([gather(g_edges, g_emb_h), gather(sg_idx, sg_emb_h)], axis=0)
    out = edge_projection(x, w_eff, b_eff, tile_rows=tile_rows)
    return out[:e_g], out[e_g:e_g + e_sg]


def _ref_edge_projection(src, dst, w_conv, b_conv, w2, b2):
    """Pure-JAX f32 reference (mirrors torch Conv1d(2->1,k3,p1) + Linear)."""
    E, D = src.shape
    x = jnp.stack([src, dst], axis=1)                 # (E, 2, D)
    xp = jnp.pad(x, ((0, 0), (0, 0), (1, 1)))         # padding=1
    conv = sum(w_conv[c, k] * xp[:, c, k:k + D]
               for c in range(2) for k in range(3)) + b_conv[0]
    return conv @ w2 + b2


if __name__ == "__main__":
    # small shapes consistent with the module
    in_dim, hidden_dim = 32, 64
    n_nodes, n_edges_g, n_edges_sg = 16, 256, 128

    key = jax.random.PRNGKey(0)
    k = jax.random.split(key, 8)

    def xavier(kk, shape, fan_in, fan_out):
        bound = (6.0 / (fan_in + fan_out)) ** 0.5
        return jax.random.uniform(kk, shape, jnp.float32, -bound, bound)

    w_conv = xavier(k[0], (2, 3), 2 * 3, 1 * 3)            # Conv1d weight (out=1,in=2,k=3)
    b_conv = jax.random.uniform(k[1], (1,), jnp.float32, -0.1, 0.1)
    w2 = xavier(k[2], (in_dim, hidden_dim), in_dim, hidden_dim)  # Linear weight (transposed)
    b2 = jax.random.uniform(k[3], (1, hidden_dim), jnp.float32, -0.1, 0.1)
    params = (w_conv, b_conv, w2, b2)

    g_emb_h = jax.random.normal(k[4], (n_nodes, in_dim), jnp.float32)
    sg_emb_h = jax.random.normal(k[5], (n_nodes, in_dim), jnp.float32)
    g_edges = jax.random.randint(k[6], (2, n_edges_g), 0, n_nodes)
    sg_edges = jax.random.randint(k[7], (2, n_edges_sg), 0, n_nodes)

    fwd = jax.jit(merg_forward)
    lr_e, sedge = fwd(params, g_edges, g_emb_h, sg_edges, sg_emb_h)
    lr_e = jax.block_until_ready(lr_e)
    sedge = jax.block_until_ready(sedge)

    # correctness check against the pure-JAX f32 reference (bf16 operands/output
    # + conv-fold reassociation -> compare at bf16-level tolerance)
    lr_e_ref = _ref_edge_projection(g_emb_h[g_edges[0]], g_emb_h[g_edges[1]],
                                    w_conv, b_conv, w2, b2)
    sedge_ref = _ref_edge_projection(sg_emb_h[sg_edges[0]], sg_emb_h[sg_edges[1]],
                                     w_conv, b_conv, w2, b2)
    assert lr_e.shape == (n_edges_g, hidden_dim)
    assert sedge.shape == (n_edges_sg, hidden_dim)
    assert jnp.allclose(lr_e.astype(jnp.float32), lr_e_ref, rtol=5e-2, atol=5e-2)
    assert jnp.allclose(sedge.astype(jnp.float32), sedge_ref, rtol=5e-2, atol=5e-2)

    print("KERNEL_OK")
</pallas_src>

<mosaic_0001>
module attributes {stable_mosaic.version = 11 : i64} {
  func.func @_edge_proj_kernel(%arg0: i32, %arg1: memref<192x128xbf16, #tpu.memory_space<vmem>>, %arg2: memref<128x128xbf16, #tpu.memory_space<vmem>>, %arg3: memref<1x128xf32, #tpu.memory_space<vmem>>, %arg4: memref<192x128xbf16, #tpu.memory_space<vmem>>) attributes {dimension_semantics = [#tpu.dimension_semantics<parallel>], iteration_bounds = array<i64: 1>, scalar_prefetch = 0 : i64, scratch_operands = 0 : i64, tpu.core_type = #tpu.core_type<tc>, window_params = [{transform_indices = @transform_0, window_bounds = array<i64: 192, 128>}, {pipeline_mode = #tpu.pipeline_mode<synchronous>, transform_indices = @transform_1, window_bounds = array<i64: 128, 128>}, {pipeline_mode = #tpu.pipeline_mode<synchronous>, transform_indices = @transform_2, window_bounds = array<i64: 1, 128>}, {transform_indices = @transform_3, window_bounds = array<i64: 192, 128>}]} {
    %c0 = arith.constant 0 : index
    %c0_0 = arith.constant 0 : index
    %0 = vector.load %arg1[%c0, %c0_0] : memref<192x128xbf16, #tpu.memory_space<vmem>>, vector<192x128xbf16>
    %c0_1 = arith.constant 0 : index
    %c0_2 = arith.constant 0 : index
    %1 = vector.load %arg2[%c0_1, %c0_2] : memref<128x128xbf16, #tpu.memory_space<vmem>>, vector<128x128xbf16>
    %cst = arith.constant dense<0.000000e+00> : vector<192x128xf32>
    %2 = tpu.matmul %0, %1, %cst {dimension_numbers = #tpu.dot_dimension_numbers<[1], [0], [0], [1], [0, 0, 1, 1], [], []>} : vector<192x128xbf16>, vector<128x128xbf16>, vector<192x128xf32> -> vector<192x128xf32>
    %c0_3 = arith.constant 0 : index
    %c0_4 = arith.constant 0 : index
    %3 = vector.load %arg3[%c0_3, %c0_4] : memref<1x128xf32, #tpu.memory_space<vmem>>, vector<1x128xf32>
    %4 = vector.broadcast %3 : vector<1x128xf32> to vector<192x128xf32>
    %5 = arith.addf %2, %4 : vector<192x128xf32>
    %6 = arith.truncf %5 : vector<192x128xf32> to vector<192x128xbf16>
    %c0_5 = arith.constant 0 : index
    %c0_6 = arith.constant 0 : index
    %7 = vector.load %arg4[%c0_5, %c0_6] : memref<192x128xbf16, #tpu.memory_space<vmem>>, vector<192x128xbf16>
    tpu.vector_store %arg4[%c0_5, %c0_6], %6 {strides = array<i32>} : memref<192x128xbf16, #tpu.memory_space<vmem>>, vector<192x128xbf16>,
    return
  }
  func.func @transform_0(%arg0: i32) -> (i32, i32) {
    %c0_i32 = arith.constant 0 : i32
    %c0_i32_0 = arith.constant 0 : i32
    return %arg0, %c0_i32 : i32, i32
  }
  func.func @transform_1(%arg0: i32) -> (i32, i32) {
    %c0_i32 = arith.constant 0 : i32
    %c0_i32_0 = arith.constant 0 : i32
    %c0_i32_1 = arith.constant 0 : i32
    return %c0_i32, %c0_i32_0 : i32, i32
  }
  func.func @transform_2(%arg0: i32) -> (i32, i32) {
    %c0_i32 = arith.constant 0 : i32
    %c0_i32_0 = arith.constant 0 : i32
    %c0_i32_1 = arith.constant 0 : i32
    return %c0_i32, %c0_i32_0 : i32, i32
  }
  func.func @transform_3(%arg0: i32) -> (i32, i32) {
    %c0_i32 = arith.constant 0 : i32
    %c0_i32_0 = arith.constant 0 : i32
    return %arg0, %c0_i32 : i32, i32
  }
}

</mosaic_0001>

<llo_original>
// kernel: tile.8
$region0: #{tile.8}
  #allocation0 [shape = 's32[1]{0}', space=sflag, size = 0x4, scoped, tag = 'scoped memory for tile.8']
  %s0 = inlined_call_operand.vmem [shape: f32[64], index: 0, kind: input, shape index: {}]
  %s1 = inlined_call_operand.vmem [shape: f32[2,64], index: 1, kind: output, shape index: {}]
  // Predicated region
  $region2: #{tile.8} parent=0 // pred_check
    _
  $region3: #{tile.8} parent=0 // pred_check_branch
    %3 = sbr.rel (0) target = $region5
  $region4: #{tile.8} parent=0 // pred_region
    _
  $region5: #{tile.8} parent=0 // pred_fallthru
    _
  %v4 = vld [vmem:[%s0] ss:$0 sm:$0xff]
  %5 = vst [vmem:[%s1] sm:$0x3] %v4

// kernel: tile.9
$region0: #{tile.9}
  %s0 = inlined_call_operand.vmem [shape: f32[2,64], index: 0, kind: input, shape index: {}]
  %s1 = inlined_call_operand.vmem [shape: f32[1,128], index: 1, kind: output, shape index: {}]
  $region1: #{tile.9} parent=0
    #allocation0 [shape = 'u8[4096]{0}', space=vmem, size = 0x1000, scoped, tag = 'scoped mem for output reshape']
    #allocation1 [shape = 'u8[4096]{0}', space=vmem, size = 0x1000, scoped, tag = 'scoped mem for input reshape']
    %s3 = sshllo.u32 0, 2
    %v4 = vld [vmem:[%s0] sm:%s3]
    %5 = vst [vmem:[#allocation1] sm:%s3] %v4
    %v6 = vld [vmem:[#allocation1] sm:$0x1]
    %vm7 = vcmask 523264
    %8 = vst.msk [vmem:[#allocation0] sm:$0x1] %vm7, %v6
    %s9 = scalar_lea.vmem [#allocation1], 1
    %v10 = vld [vmem:[%s9] sm:$0x1]
    %11 = vrot.lane.b32.xlu0 %v10, 64
    %v12 = vpop.permute.xlu0 %11
    %vm13 = vcmask 1048064
    %14 = vst.msk [vmem:[#allocation0] sm:$0x1] %vm13, %v12
    %s16 = sshllo.u32 0, 1
    %v18 = vld [vmem:[#allocation0] sm:%s16]
    %s19 = sshllo.u32 0, 1
    %20 = vst [vmem:[%s1] sm:%s19] %v18

// kernel: merg_forward.1
$region0: #{merg_forward.1}
  #allocation0 [shape = 'u32[]', space=smem, size = 0x4, offset = 0x4, fixed_abs, tag = 'smem constant byte address 0x4 - core index']
  #allocation1 [shape = 'u32[144,128]{1,0:T(1,128)}', space=vmem, size = 0x12000, scoped, tag = 'internal scratch']
  %s0 = inlined_call_operand.vmem [shape: bf16[192,128], index: 0, kind: input, shape index: {}]
  %s1 = inlined_call_operand.vmem [shape: bf16[128,128], index: 1, kind: input, shape index: {}]
  %s2 = inlined_call_operand.vmem [shape: f32[1,128], index: 2, kind: input, shape index: {}]
  %s3 = inlined_call_operand.vmem [shape: bf16[192,128], index: 3, kind: output, shape index: {}]
  %s4 = sld [smem:[#allocation0]]
  $region22: #{merg_forward.1} parent=0
    _
  %s6 = ssub.s32 1, %s4
  %s7 = scalar_select 0, %s6, %s4
  // Predicated region
  $region2: #{merg_forward.1} parent=0 // pred_check
    _
  $region3: #{merg_forward.1} parent=0 // pred_check_branch
    %9 = sbr.rel (0) target = $region5
  $region4: #{merg_forward.1} parent=0 // pred_region
    _
  $region5: #{merg_forward.1} parent=0 // pred_fallthru
    _
  // Predicated region
  $region6: #{merg_forward.1} parent=0 // pred_check
    _
  $region7: #{merg_forward.1} parent=0 // pred_check_branch
    %11 = sbr.rel (0) target = $region9
  $region8: #{merg_forward.1} parent=0 // pred_region
    _
  $region9: #{merg_forward.1} parent=0 // pred_fallthru
    _
  // Predicated region
  $region10: #{merg_forward.1} parent=0 // pred_check
    _
  $region11: #{merg_forward.1} parent=0 // pred_check_branch
    %13 = sbr.rel (0) target = $region13
  $region12: #{merg_forward.1} parent=0 // pred_region
    _
  $region13: #{merg_forward.1} parent=0 // pred_fallthru
    _
  %v15 = vld [vmem:[%s0] sm:$0xf]
  %v16 = vld [vmem:[%s0 + $0x4] sm:$0xf]
  %v17 = vld [vmem:[%s0 + $0x8] sm:$0xf]
  %v18 = vld [vmem:[%s0 + $0xc] sm:$0xf]
  %v19 = vld [vmem:[%s0 + $0x10] sm:$0xf]
  %v20 = vld [vmem:[%s0 + $0x14] sm:$0xf]
  %v21 = vld [vmem:[%s0 + $0x18] sm:$0xf]
  %v22 = vld [vmem:[%s0 + $0x1c] sm:$0xf]
  %v23 = vld [vmem:[%s0 + $0x20] sm:$0xf]
  %v24 = vld [vmem:[%s0 + $0x24] sm:$0xf]
  %v25 = vld [vmem:[%s0 + $0x28] sm:$0xf]
  %v26 = vld [vmem:[%s0 + $0x2c] sm:$0xf]
  %v27 = vld [vmem:[%s0 + $0x30] sm:$0xf]
  %v28 = vld [vmem:[%s0 + $0x34] sm:$0xf]
  %v29 = vld [vmem:[%s0 + $0x38] sm:$0xf]
  %v30 = vld [vmem:[%s0 + $0x3c] sm:$0xf]
  %v31 = vld [vmem:[%s0 + $0x40] sm:$0xf]
  %v32 = vld [vmem:[%s0 + $0x44] sm:$0xf]
  %v33 = vld [vmem:[%s0 + $0x48] sm:$0xf]
  %v34 = vld [vmem:[%s0 + $0x4c] sm:$0xf]
  %v35 = vld [vmem:[%s0 + $0x50] sm:$0xf]
  %v36 = vld [vmem:[%s0 + $0x54] sm:$0xf]
  %v37 = vld [vmem:[%s0 + $0x58] sm:$0xf]
  %v38 = vld [vmem:[%s0 + $0x5c] sm:$0xf]
  %v39 = vld [vmem:[%s1] sm:$0xf]
  %v40 = vld [vmem:[%s1 + $0x4] sm:$0xf]
  %v41 = vld [vmem:[%s1 + $0x8] sm:$0xf]
  %v42 = vld [vmem:[%s1 + $0xc] sm:$0xf]
  %v43 = vld [vmem:[%s1 + $0x10] sm:$0xf]
  %v44 = vld [vmem:[%s1 + $0x14] sm:$0xf]
  %v45 = vld [vmem:[%s1 + $0x18] sm:$0xf]
  %v46 = vld [vmem:[%s1 + $0x1c] sm:$0xf]
  %v47 = vld [vmem:[%s1 + $0x20] sm:$0xf]
  %v48 = vld [vmem:[%s1 + $0x24] sm:$0xf]
  %v49 = vld [vmem:[%s1 + $0x28] sm:$0xf]
  %v50 = vld [vmem:[%s1 + $0x2c] sm:$0xf]
  %v51 = vld [vmem:[%s1 + $0x30] sm:$0xf]
  %v52 = vld [vmem:[%s1 + $0x34] sm:$0xf]
  %v53 = vld [vmem:[%s1 + $0x38] sm:$0xf]
  %v54 = vld [vmem:[%s1 + $0x3c] sm:$0xf]
  %v55 = vld [vmem:[%s2] sm:$0x1]
  %v57 = vlaneseq
  %v58 = vshrl.u32 %v57, 7
  %v59 = vsub.s32 0, %v58
  %v60 = vrot.slane %v55, %v59
  %v86 = vunpack.c.l.b16 %v15
  %v87 = vunpack.c.l.b16 %v16
  %v88 = vunpack.c.l.b16 %v17
  %v89 = vunpack.c.l.b16 %v18
  %v90 = vunpack.c.l.b16 %v19
  %v91 = vunpack.c.l.b16 %v20
  %v92 = vunpack.c.l.b16 %v21
  %v93 = vunpack.c.l.b16 %v22
  %v94 = vunpack.c.l.b16 %v23
  %v95 = vunpack.c.l.b16 %v24
  %v96 = vunpack.c.l.b16 %v25
  %v97 = vunpack.c.l.b16 %v26
  %v98 = vunpack.c.l.b16 %v27
  %v99 = vunpack.c.l.b16 %v28
  %v100 = vunpack.c.l.b16 %v29
  %v101 = vunpack.c.l.b16 %v30
  %v102 = vunpack.c.l.b16 %v31
  %v103 = vunpack.c.l.b16 %v32
  %v104 = vunpack.c.l.b16 %v33
  %v105 = vunpack.c.l.b16 %v34
  %v106 = vunpack.c.l.b16 %v35
  %v107 = vunpack.c.l.b16 %v36
  %v108 = vunpack.c.l.b16 %v37
  %v109 = vunpack.c.l.b16 %v38
  %v110 = vpack.c.b16 %v87, %v86
  %v111 = vpack.c.b16 %v89, %v88
  %v112 = vpack.c.b16 %v91, %v90
  %v113 = vpack.c.b16 %v93, %v92
  %v114 = vpack.c.b16 %v95, %v94
  %v115 = vpack.c.b16 %v97, %v96
  %v116 = vpack.c.b16 %v99, %v98
  %v117 = vpack.c.b16 %v101, %v100
  %v118 = vpack.c.b16 %v103, %v102
  %v119 = vpack.c.b16 %v105, %v104
  %v120 = vpack.c.b16 %v107, %v106
  %v121 = vpack.c.b16 %v109, %v108
  %v150 = vunpack.c.l.b16 %v39
  %v151 = vunpack.c.l.b16 %v40
  %v152 = vunpack.c.l.b16 %v41
  %v153 = vunpack.c.l.b16 %v42
  %v154 = vunpack.c.l.b16 %v43
  %v155 = vunpack.c.l.b16 %v44
  %v156 = vunpack.c.l.b16 %v45
  %v157 = vunpack.c.l.b16 %v46
  %v158 = vunpack.c.l.b16 %v47
  %v159 = vunpack.c.l.b16 %v48
  %v160 = vunpack.c.l.b16 %v49
  %v161 = vunpack.c.l.b16 %v50
  %v162 = vunpack.c.l.b16 %v51
  %v163 = vunpack.c.l.b16 %v52
  %v164 = vunpack.c.l.b16 %v53
  %v165 = vunpack.c.l.b16 %v54
  %v166 = vpack.c.b16 %v151, %v150
  %v167 = vpack.c.b16 %v153, %v152
  %v168 = vpack.c.b16 %v155, %v154
  %v169 = vpack.c.b16 %v157, %v156
  %v170 = vpack.c.b16 %v159, %v158
  %v171 = vpack.c.b16 %v161, %v160
  %v172 = vpack.c.b16 %v163, %v162
  %v173 = vpack.c.b16 %v165, %v164
  %182 = vmatprep.subr.bf16.mxu0 0
  %183 = vmatpush1.bf16.msra.mxu0 %v166
  %184 = vmatprep.subr.bf16.mxu0 0
  %185 = vmatpush1.bf16.msra.mxu0 %v167
  %186 = vmatprep.subr.bf16.mxu0 0
  %187 = vmatpush1.bf16.msra.mxu0 %v168
  %188 = vmatprep.subr.bf16.mxu0 0
  %189 = vmatpush1.bf16.msra.mxu0 %v169
  %190 = vmatprep.subr.bf16.mxu0 0
  %191 = vmatpush1.bf16.msra.mxu0 %v170
  %192 = vmatprep.subr.bf16.mxu0 0
  %193 = vmatpush1.bf16.msra.mxu0 %v171
  %194 = vmatprep.subr.bf16.mxu0 0
  %195 = vmatpush1.bf16.msra.mxu0 %v172
  %196 = vmatprep.subr.bf16.mxu0 0
  %197 = vmatpush1.bf16.msra.mxu0 %v173
  %198 = vmatprep.subr.bf16.mxu0 0
  %199 = vmatpush1.bf16.msra.mxu0 0
  %200 = vmatprep.subr.bf16.mxu0 0
  %201 = vmatpush1.bf16.msra.mxu0 0
  %202 = vmatprep.subr.bf16.mxu0 0
  %203 = vmatpush1.bf16.msra.mxu0 0
  %204 = vmatprep.subr.bf16.mxu0 0
  %205 = vmatpush1.bf16.msra.mxu0 0
  %206 = vmatprep.subr.bf16.mxu0 0
  %207 = vmatpush1.bf16.msra.mxu0 0
  %208 = vmatprep.subr.bf16.mxu0 0
  %209 = vmatpush1.bf16.msra.mxu0 0
  %210 = vmatprep.subr.bf16.mxu0 0
  %211 = vmatpush1.bf16.msra.mxu0 0
  %212 = vmatprep.subr.bf16.mxu0 0
  %213 = vmatpush1.bf16.msra.mxu0 0
  %214 = vmatprep.mubr.bf16.mxu0 0
  %215 = vmatmul.mubr.bf16.gmra.mrb[0].mxu0 %v110
  %v216 = vpop.f32.mrb[0].mxu0
  %v217 = vadd.f32 %v60, %v216
  %v218 = vpop.f32.mrb[0].mxu0
  %v219 = vpop.f32.mrb[0].mxu0
  %v220 = vadd.f32 %v60, %v219
  %v221 = vpop.f32.mrb[0].mxu0
  %222 = vmatprep.mubr.bf16.mxu0 0
  %223 = vmatmul.mubr.bf16.gmra.mrb[0].mxu0 %v111
  %v224 = vpop.f32.mrb[0].mxu0
  %v225 = vadd.f32 %v60, %v224
  %v226 = vpop.f32.mrb[0].mxu0
  %v227 = vpop.f32.mrb[0].mxu0
  %v228 = vadd.f32 %v60, %v227
  %v229 = vpop.f32.mrb[0].mxu0
  %230 = vmatprep.mubr.bf16.mxu0 0
  %231 = vmatmul.mubr.bf16.gmra.mrb[0].mxu0 %v112
  %v232 = vpop.f32.mrb[0].mxu0
  %v233 = vadd.f32 %v60, %v232
  %v234 = vpop.f32.mrb[0].mxu0
  %v235 = vpop.f32.mrb[0].mxu0
  %v236 = vadd.f32 %v60, %v235
  %v237 = vpop.f32.mrb[0].mxu0
  %238 = vmatprep.mubr.bf16.mxu0 0
  %239 = vmatmul.mubr.bf16.gmra.mrb[0].mxu0 %v113
  %v240 = vpop.f32.mrb[0].mxu0
  %v241 = vadd.f32 %v60, %v240
  %v242 = vpop.f32.mrb[0].mxu0
  %v243 = vpop.f32.mrb[0].mxu0
  %v244 = vadd.f32 %v60, %v243
  %v245 = vpop.f32.mrb[0].mxu0
  %246 = vmatprep.mubr.bf16.mxu0 0
  %247 = vmatmul.mubr.bf16.gmra.mrb[0].mxu0 %v114
  %v248 = vpop.f32.mrb[0].mxu0
  %v249 = vadd.f32 %v60, %v248
  %v250 = vpop.f32.mrb[0].mxu0
  %v251 = vpop.f32.mrb[0].mxu0
  %v252 = vadd.f32 %v60, %v251
  %v253 = vpop.f32.mrb[0].mxu0
  %254 = vmatprep.mubr.bf16.mxu0 0
  %255 = vmatmul.mubr.bf16.gmra.mrb[0].mxu0 %v115
  %v256 = vpop.f32.mrb[0].mxu0
  %v257 = vadd.f32 %v60, %v256
  %v258 = vpop.f32.mrb[0].mxu0
  %v259 = vpop.f32.mrb[0].mxu0
  %v260 = vadd.f32 %v60, %v259
  %v261 = vpop.f32.mrb[0].mxu0
  %262 = vmatprep.mubr.bf16.mxu0 0
  %263 = vmatmul.mubr.bf16.gmra.mrb[0].mxu0 %v116
  %v264 = vpop.f32.mrb[0].mxu0
  %v265 = vadd.f32 %v60, %v264
  %v266 = vpop.f32.mrb[0].mxu0
  %v267 = vpop.f32.mrb[0].mxu0
  %v268 = vadd.f32 %v60, %v267
  %v269 = vpop.f32.mrb[0].mxu0
  %270 = vmatprep.mubr.bf16.mxu0 0
  %271 = vmatmul.mubr.bf16.gmra.mrb[0].mxu0 %v117
  %v272 = vpop.f32.mrb[0].mxu0
  %v273 = vadd.f32 %v60, %v272
  %v274 = vpop.f32.mrb[0].mxu0
  %v275 = vpop.f32.mrb[0].mxu0
  %v276 = vadd.f32 %v60, %v275
  %v277 = vpop.f32.mrb[0].mxu0
  %278 = vmatprep.mubr.bf16.mxu0 0
  %279 = vmatmul.mubr.bf16.gmra.mrb[0].mxu0 %v118
  %v280 = vpop.f32.mrb[0].mxu0
  %v281 = vadd.f32 %v60, %v280
  %v282 = vpop.f32.mrb[0].mxu0
  %v283 = vpop.f32.mrb[0].mxu0
  %v284 = vadd.f32 %v60, %v283
  %v285 = vpop.f32.mrb[0].mxu0
  %286 = vmatprep.mubr.bf16.mxu0 0
  %287 = vmatmul.mubr.bf16.gmra.mrb[0].mxu0 %v119
  %v288 = vpop.f32.mrb[0].mxu0
  %v289 = vadd.f32 %v60, %v288
  %v290 = vpop.f32.mrb[0].mxu0
  %v291 = vpop.f32.mrb[0].mxu0
  %v292 = vadd.f32 %v60, %v291
  %v293 = vpop.f32.mrb[0].mxu0
  %294 = vmatprep.mubr.bf16.mxu0 0
  %295 = vmatmul.mubr.bf16.gmra.mrb[0].mxu0 %v120
  %v296 = vpop.f32.mrb[0].mxu0
  %v297 = vadd.f32 %v60, %v296
  %v298 = vpop.f32.mrb[0].mxu0
  %v299 = vpop.f32.mrb[0].mxu0
  %v300 = vadd.f32 %v60, %v299
  %v301 = vpop.f32.mrb[0].mxu0
  %302 = vmatprep.mubr.bf16.mxu0 0
  %303 = vmatmul.mubr.bf16.gmra.mrb[0].mxu0 %v121
  %v304 = vpop.f32.mrb[0].mxu0
  %v305 = vadd.f32 %v60, %v304
  %v306 = vpop.f32.mrb[0].mxu0
  %v307 = vpop.f32.mrb[0].mxu0
  %v308 = vadd.f32 %v60, %v307
  %v309 = vpop.f32.mrb[0].mxu0
  %310 = vdwg.mxu0
  %v311 = vpack.c.bf16 %v220, %v217
  %v312 = vpack.c.bf16 %v228, %v225
  %v313 = vpack.c.bf16 %v236, %v233
  %v314 = vpack.c.bf16 %v244, %v241
  %v315 = vpack.c.bf16 %v252, %v249
  %v316 = vpack.c.bf16 %v260, %v257
  %v317 = vpack.c.bf16 %v268, %v265
  %v318 = vpack.c.bf16 %v276, %v273
  %v319 = vpack.c.bf16 %v284, %v281
  %v320 = vpack.c.bf16 %v292, %v289
  %v321 = vpack.c.bf16 %v300, %v297
  %v322 = vpack.c.bf16 %v308, %v305
  %v335 = vunpack.c.l.b16 %v311
  %v336 = vunpack.c.h.b16 %v311
  %v337 = vunpack.c.l.b16 %v312
  %v338 = vunpack.c.h.b16 %v312
  %v339 = vunpack.c.l.b16 %v313
  %v340 = vunpack.c.h.b16 %v313
  %v341 = vunpack.c.l.b16 %v314
  %v342 = vunpack.c.h.b16 %v314
  %v343 = vunpack.c.l.b16 %v315
  %v344 = vunpack.c.h.b16 %v315
  %v345 = vunpack.c.l.b16 %v316
  %v346 = vunpack.c.h.b16 %v316
  %v347 = vunpack.c.l.b16 %v317
  %v348 = vunpack.c.h.b16 %v317
  %v349 = vunpack.c.l.b16 %v318
  %v350 = vunpack.c.h.b16 %v318
  %v351 = vunpack.c.l.b16 %v319
  %v352 = vunpack.c.h.b16 %v319
  %v353 = vunpack.c.l.b16 %v320
  %v354 = vunpack.c.h.b16 %v320
  %v355 = vunpack.c.l.b16 %v321
  %v356 = vunpack.c.h.b16 %v321
  %v357 = vunpack.c.l.b16 %v322
  %v358 = vunpack.c.h.b16 %v322
  %v359 = vpack.c.b16 %v335, %v335
  %v360 = vpack.c.b16 %v336, %v336
  %v361 = vpack.c.b16 %v337, %v337
  %v362 = vpack.c.b16 %v338, %v338
  %v363 = vpack.c.b16 %v339, %v339
  %v364 = vpack.c.b16 %v340, %v340
  %v365 = vpack.c.b16 %v341, %v341
  %v366 = vpack.c.b16 %v342, %v342
  %v367 = vpack.c.b16 %v343, %v343
  %v368 = vpack.c.b16 %v344, %v344
  %v369 = vpack.c.b16 %v345, %v345
  %v370 = vpack.c.b16 %v346, %v346
  %v371 = vpack.c.b16 %v347, %v347
  %v372 = vpack.c.b16 %v348, %v348
  %v373 = vpack.c.b16 %v349, %v349
  %v374 = vpack.c.b16 %v350, %v350
  %v375 = vpack.c.b16 %v351, %v351
  %v376 = vpack.c.b16 %v352, %v352
  %v377 = vpack.c.b16 %v353, %v353
  %v378 = vpack.c.b16 %v354, %v354
  %v379 = vpack.c.b16 %v355, %v355
  %v380 = vpack.c.b16 %v356, %v356
  %v381 = vpack.c.b16 %v357, %v357
  %v382 = vpack.c.b16 %v358, %v358
  %407 = vst [vmem:[%s3] sm:$0xf] %v359
  %408 = vst [vmem:[%s3 + $0x4] sm:$0xf] %v360
  %409 = vst [vmem:[%s3 + $0x8] sm:$0xf] %v361
  %410 = vst [vmem:[%s3 + $0xc] sm:$0xf] %v362
  %411 = vst [vmem:[%s3 + $0x10] sm:$0xf] %v363
  %412 = vst [vmem:[%s3 + $0x14] sm:$0xf] %v364
  %413 = vst [vmem:[%s3 + $0x18] sm:$0xf] %v365
  %414 = vst [vmem:[%s3 + $0x1c] sm:$0xf] %v366
  %415 = vst [vmem:[%s3 + $0x20] sm:$0xf] %v367
  %416 = vst [vmem:[%s3 + $0x24] sm:$0xf] %v368
  %417 = vst [vmem:[%s3 + $0x28] sm:$0xf] %v369
  %418 = vst [vmem:[%s3 + $0x2c] sm:$0xf] %v370
  %419 = vst [vmem:[%s3 + $0x30] sm:$0xf] %v371
  %420 = vst [vmem:[%s3 + $0x34] sm:$0xf] %v372
  %421 = vst [vmem:[%s3 + $0x38] sm:$0xf] %v373
  %422 = vst [vmem:[%s3 + $0x3c] sm:$0xf] %v374
  %423 = vst [vmem:[%s3 + $0x40] sm:$0xf] %v375
  %424 = vst [vmem:[%s3 + $0x44] sm:$0xf] %v376
  %425 = vst [vmem:[%s3 + $0x48] sm:$0xf] %v377
  %426 = vst [vmem:[%s3 + $0x4c] sm:$0xf] %v378
  %427 = vst [vmem:[%s3 + $0x50] sm:$0xf] %v379
  %428 = vst [vmem:[%s3 + $0x54] sm:$0xf] %v380
  %429 = vst [vmem:[%s3 + $0x58] sm:$0xf] %v381
  %430 = vst [vmem:[%s3 + $0x5c] sm:$0xf] %v382
  // Predicated region
  $region14: #{merg_forward.1} parent=0 // pred_check
    _
  $region15: #{merg_forward.1} parent=0 // pred_check_branch
    %432 = sbr.rel (0) target = $region17
  $region16: #{merg_forward.1} parent=0 // pred_region
    _
  $region17: #{merg_forward.1} parent=0 // pred_fallthru
    _
  // Predicated region
  $region18: #{merg_forward.1} parent=0 // pred_check
    _
  $region19: #{merg_forward.1} parent=0 // pred_check_branch
    %434 = sbr.rel (0) target = $region21
  $region20: #{merg_forward.1} parent=0 // pred_region
    _
  $region21: #{merg_forward.1} parent=0 // pred_fallthru
    _

</llo_original>
